<compile_context>
chip_gen: v5e
topology: v5e:2x2
jax: 0.10.0
libtpu: 0.0.40
codegen_flags: <defaults>
</compile_context>

<pallas_src>
import functools

import jax
import jax.numpy as jnp
from jax.experimental import pallas as pl
from jax.experimental.pallas import tpu as pltpu

_GROUP = 8  # batch rows packed per sublane-row (free row-major HBM reshape)


def _sigmoid_eup(z_f32, eup_dtype):
    # sigmoid(z) = 1 / (1 + exp(-z)).  exp runs on the EUP in `eup_dtype`
    # (bf16 doubles EUP throughput on v6e/v7x; v5e keeps f32), and the divide
    # is the approximate EUP reciprocal, keeping both off the VALU slots.
    e = jnp.exp(-(z_f32.astype(eup_dtype))).astype(jnp.float32)
    return pl.reciprocal(1.0 + e, approx=True)


def _value_net_kernel(x_ref,
                      w1_ref, b1_ref,
                      w2_ref, b2_ref,
                      w3_ref, b3_ref,
                      w4_ref, b4_ref,
                      o_ref, *, eup_dtype):
    # x_ref: (TB/8, 8*F) lane-dense packed rows: x_pk[r, j*F + f] = x[8r+j, f].
    # All weights are 8-way block-diagonal, so activations stay packed as
    # a_pk[r, j*D + d] = a[8r+j, d] through every layer -> no relayouts.
    xp = x_ref[...].astype(jnp.bfloat16)                      # bf16 MXU operand

    # layer1: Linear(F, 64) + ReLU            -> (TB/8, 8*64)
    z1 = jnp.dot(xp, w1_ref[...], preferred_element_type=jnp.float32) + b1_ref[...]
    a1 = jnp.maximum(z1, 0.0).astype(jnp.bfloat16)

    # layer2: Linear(64, 32) + Sigmoid        -> (TB/8, 8*32)
    z2 = jnp.dot(a1, w2_ref[...], preferred_element_type=jnp.float32) + b2_ref[...]
    a2 = _sigmoid_eup(z2, eup_dtype).astype(jnp.bfloat16)

    # layer3: Linear(32, 10) + ReLU           -> (TB/8, 8*10)
    z3 = jnp.dot(a2, w3_ref[...], preferred_element_type=jnp.float32) + b3_ref[...]
    a3 = jnp.maximum(z3, 0.0).astype(jnp.bfloat16)

    # layer4: Linear(10, 1) + Sigmoid         -> (TB/8, 8) packed output
    z4 = jnp.dot(a3, w4_ref[...], preferred_element_type=jnp.float32) + b4_ref[...]
    o_ref[...] = _sigmoid_eup(z4, eup_dtype).astype(o_ref.dtype)


def pack_params(params, *, weight_dtype=jnp.bfloat16):
    """PyTorch-layout w{i}:(out,in), b{i}:(out,) -> 8-way block-diagonal form.

    W_pk[j*in + i, j*out + o] = W[o, i];  b_pk[0, j*out + o] = b[o].
    Packed-weight VMEM total is ~0.4 MiB in bf16 (done once; cache in prod).
    """
    packed = []
    eye = jnp.eye(_GROUP, dtype=jnp.float32)
    for i in range(1, 5):
        w = jnp.asarray(params[f"w{i}"], jnp.float32)              # (out, in)
        b = jnp.asarray(params[f"b{i}"], jnp.float32).reshape(-1)  # (out,)
        out_d, in_d = w.shape
        wb = jnp.einsum("jk,io->jiko", eye, w.T).reshape(_GROUP * in_d,
                                                         _GROUP * out_d)
        bb = jnp.tile(b.reshape(1, out_d), (1, _GROUP))            # (1, 8*out)
        packed += [wb.astype(weight_dtype), bb]
    return tuple(packed)


def _tpu_config():
    kind = ""
    try:
        kind = jax.devices()[0].device_kind.lower()
    except Exception:
        pass
    if "v7" in kind:   # 64 MiB VMEM per TensorCore -> keep headroom
        return dict(gen="v7", tb=16 * 1024, vmem_bytes=40 * 1024 * 1024,
                    eup_dtype=jnp.bfloat16)
    if "v6" in kind:   # 128 MiB VMEM, raise scoped limit, bigger tile
        return dict(gen="v6", tb=32 * 1024, vmem_bytes=64 * 1024 * 1024,
                    eup_dtype=jnp.bfloat16)
    if "v5" in kind:   # no bf16 VPU/EUP -> f32 elementwise path
        return dict(gen="v5", tb=8 * 1024, vmem_bytes=64 * 1024 * 1024,
                    eup_dtype=jnp.float32)
    # Unknown / older chip: conservative tile, default scoped-VMEM limit.
    return dict(gen="unknown", tb=4 * 1024, vmem_bytes=None,
                eup_dtype=jnp.float32)


def value_network_forward(x, params, *, tb_max=None):
    """x: [B, input_size] (float32 or bfloat16; bf16 halves the HBM read
    traffic of this mem-bound kernel).  params: PyTorch-layout dict.
    Returns [B, 1] float32.

    VMEM accounting per batch tile TB (f32 x): x block = TB*F*4 B exactly
    (lane-dense, no 8x padding) x2 buffers; output block = TB*64 B (lane-padded
    f32) x2; f32 intermediates peak ~ TB*384 B; packed bf16 weights ~0.4 MiB.
    At TB=32768 (v6e) that is ~25-30 MiB, hence the explicit 40-64 MiB
    vmem_limit_bytes per generation above.
    """
    cfg = _tpu_config()
    B, F = x.shape

    tb = cfg["tb"] if tb_max is None else int(tb_max)
    tb = max(128, pl.cdiv(tb, 128) * 128)            # enforce lane alignment
    TB = min(tb, pl.cdiv(B, 128) * 128)
    B_pad = pl.cdiv(B, TB) * TB
    if B_pad != B:
        x = jnp.pad(x, ((0, B_pad - B), (0, 0)))
    num_tiles = B_pad // TB

    # Free row-major reshape: 8 consecutive batch rows share one sublane-row,
    # so the x tile is lane-dense and layer 1 needs no in-kernel transpose.
    xp = x.reshape(B_pad // _GROUP, _GROUP * F)
    w1, b1, w2, b2, w3, b3, w4, b4 = pack_params(params)

    const2d = lambda i: (0, 0)     # weights/biases: VMEM-resident, DMA'd once
    full_spec = lambda a: pl.BlockSpec(a.shape, const2d)

    if cfg["gen"] == "v7" and num_tiles >= 2 and num_tiles % 2 == 0:
        # Actually shard tiles across both TensorCores on v7x.
        dim_sem = (getattr(pltpu, "CORE_PARALLEL", "parallel"),)
    else:
        dim_sem = ("parallel",)
    cp_kwargs = dict(dimension_semantics=dim_sem)
    if cfg["vmem_bytes"] is not None:
        cp_kwargs["vmem_limit_bytes"] = cfg["vmem_bytes"]

    kernel = functools.partial(_value_net_kernel, eup_dtype=cfg["eup_dtype"])

    out_pk = pl.pallas_call(
        kernel,
        out_shape=jax.ShapeDtypeStruct((B_pad // _GROUP, _GROUP), jnp.float32),
        grid=(num_tiles,),
        in_specs=[
            pl.BlockSpec((TB // _GROUP, _GROUP * F), lambda i: (i, 0)),  # x
            full_spec(w1), full_spec(b1),     # (128, 512), (1, 512)
            full_spec(w2), full_spec(b2),     # (512, 256), (1, 256)
            full_spec(w3), full_spec(b3),     # (256,  80), (1,  80)
            full_spec(w4), full_spec(b4),     # ( 80,   8), (1,   8)
        ],
        out_specs=pl.BlockSpec((TB // _GROUP, _GROUP), lambda i: (i, 0)),
        compiler_params=pltpu.CompilerParams(**cp_kwargs),
    )(xp, w1, b1, w2, b2, w3, b3, w4, b4)

    # Free reshape back: out_pk[r, j] == y[8*r + j].
    return out_pk.reshape(B_pad, 1)[:B]


def init_params(key, input_size):
    """nn.Linear-style init (uniform +/- 1/sqrt(fan_in)), PyTorch layout."""
    dims = [(64, input_size), (32, 64), (10, 32), (1, 10)]
    params = {}
    for i, (fan_out, fan_in) in enumerate(dims, start=1):
        key, kw, kb = jax.random.split(key, 3)
        bound = 1.0 / (float(fan_in) ** 0.5)
        params[f"w{i}"] = jax.random.uniform(
            kw, (fan_out, fan_in), jnp.float32, minval=-bound, maxval=bound)
        params[f"b{i}"] = jax.random.uniform(
            kb, (fan_out,), jnp.float32, minval=-bound, maxval=bound)
    return params


def _reference_forward(x, p):
    a1 = jnp.maximum(x @ p["w1"].T + p["b1"], 0.0)
    a2 = jax.nn.sigmoid(a1 @ p["w2"].T + p["b2"])
    a3 = jnp.maximum(a2 @ p["w3"].T + p["b3"], 0.0)
    return jax.nn.sigmoid(a3 @ p["w4"].T + p["b4"])


if __name__ == "__main__":
    key = jax.random.PRNGKey(0)
    batch, input_size = 2, 16

    kx, kp = jax.random.split(key)
    x = jax.random.normal(kx, (batch, input_size), jnp.float32)
    params = init_params(kp, input_size)

    out = jax.block_until_ready(value_network_forward(x, params))
    ref = _reference_forward(x, params)
    assert out.shape == (batch, 1)
    # bf16 MXU operands + approx-EUP sigmoid -> relaxed tolerance vs f32 ref.
    assert jnp.allclose(out, ref, atol=5e-2, rtol=5e-2)

    # Multi-tile grid, non-multiple-of-tile batch, and bf16 x storage in HBM
    # (halves the dominant HBM read traffic).
    kx2 = jax.random.fold_in(kx, 1)
    x2 = jax.random.normal(kx2, (300, input_size), jnp.float32)
    out2 = jax.block_until_ready(
        value_network_forward(x2.astype(jnp.bfloat16), params, tb_max=128))
    assert out2.shape == (300, 1)
    assert jnp.allclose(out2, _reference_forward(x2, params),
                        atol=5e-2, rtol=5e-2)

    print("KERNEL_OK")
</pallas_src>

<mosaic_0001>
module attributes {stable_mosaic.version = 11 : i64} {
  func.func @_value_net_kernel(%arg0: i32, %arg1: memref<16x128xf32, #tpu.memory_space<vmem>>, %arg2: memref<128x512xbf16, #tpu.memory_space<vmem>>, %arg3: memref<1x512xf32, #tpu.memory_space<vmem>>, %arg4: memref<512x256xbf16, #tpu.memory_space<vmem>>, %arg5: memref<1x256xf32, #tpu.memory_space<vmem>>, %arg6: memref<256x80xbf16, #tpu.memory_space<vmem>>, %arg7: memref<1x80xf32, #tpu.memory_space<vmem>>, %arg8: memref<80x8xbf16, #tpu.memory_space<vmem>>, %arg9: memref<1x8xf32, #tpu.memory_space<vmem>>, %arg10: memref<16x8xf32, #tpu.memory_space<vmem>>) attributes {dimension_semantics = [#tpu.dimension_semantics<parallel>], iteration_bounds = array<i64: 1>, scalar_prefetch = 0 : i64, scratch_operands = 0 : i64, tpu.core_type = #tpu.core_type<tc>, window_params = [{transform_indices = @transform_0, window_bounds = array<i64: 16, 128>}, {pipeline_mode = #tpu.pipeline_mode<synchronous>, transform_indices = @transform_1, window_bounds = array<i64: 128, 512>}, {pipeline_mode = #tpu.pipeline_mode<synchronous>, transform_indices = @transform_2, window_bounds = array<i64: 1, 512>}, {pipeline_mode = #tpu.pipeline_mode<synchronous>, transform_indices = @transform_3, window_bounds = array<i64: 512, 256>}, {pipeline_mode = #tpu.pipeline_mode<synchronous>, transform_indices = @transform_4, window_bounds = array<i64: 1, 256>}, {pipeline_mode = #tpu.pipeline_mode<synchronous>, transform_indices = @transform_5, window_bounds = array<i64: 256, 80>}, {pipeline_mode = #tpu.pipeline_mode<synchronous>, transform_indices = @transform_6, window_bounds = array<i64: 1, 80>}, {pipeline_mode = #tpu.pipeline_mode<synchronous>, transform_indices = @transform_7, window_bounds = array<i64: 80, 8>}, {pipeline_mode = #tpu.pipeline_mode<synchronous>, transform_indices = @transform_8, window_bounds = array<i64: 1, 8>}, {transform_indices = @transform_9, window_bounds = array<i64: 16, 8>}]} {
    %c0 = arith.constant 0 : index
    %c0_0 = arith.constant 0 : index
    %0 = vector.load %arg1[%c0, %c0_0] : memref<16x128xf32, #tpu.memory_space<vmem>>, vector<16x128xf32>
    %1 = arith.truncf %0 : vector<16x128xf32> to vector<16x128xbf16>
    %c0_1 = arith.constant 0 : index
    %c0_2 = arith.constant 0 : index
    %2 = vector.load %arg2[%c0_1, %c0_2] : memref<128x512xbf16, #tpu.memory_space<vmem>>, vector<128x512xbf16>
    %cst = arith.constant dense<0.000000e+00> : vector<16x512xf32>
    %3 = tpu.matmul %1, %2, %cst {dimension_numbers = #tpu.dot_dimension_numbers<[1], [0], [0], [1], [0, 0, 1, 1], [], []>} : vector<16x128xbf16>, vector<128x512xbf16>, vector<16x512xf32> -> vector<16x512xf32>
    %c0_3 = arith.constant 0 : index
    %c0_4 = arith.constant 0 : index
    %4 = vector.load %arg3[%c0_3, %c0_4] : memref<1x512xf32, #tpu.memory_space<vmem>>, vector<1x512xf32>
    %5 = vector.broadcast %4 : vector<1x512xf32> to vector<16x512xf32>
    %6 = arith.addf %3, %5 : vector<16x512xf32>
    %cst_5 = arith.constant 0.000000e+00 : f32
    %7 = vector.broadcast %cst_5 : f32 to vector<16x512xf32>
    %8 = arith.maximumf %6, %7 : vector<16x512xf32>
    %9 = arith.truncf %8 : vector<16x512xf32> to vector<16x512xbf16>
    %c0_6 = arith.constant 0 : index
    %c0_7 = arith.constant 0 : index
    %10 = vector.load %arg4[%c0_6, %c0_7] : memref<512x256xbf16, #tpu.memory_space<vmem>>, vector<512x256xbf16>
    %cst_8 = arith.constant dense<0.000000e+00> : vector<16x256xf32>
    %11 = tpu.matmul %9, %10, %cst_8 {dimension_numbers = #tpu.dot_dimension_numbers<[1], [0], [0], [1], [0, 0, 1, 1], [], []>} : vector<16x512xbf16>, vector<512x256xbf16>, vector<16x256xf32> -> vector<16x256xf32>
    %c0_9 = arith.constant 0 : index
    %c0_10 = arith.constant 0 : index
    %12 = vector.load %arg5[%c0_9, %c0_10] : memref<1x256xf32, #tpu.memory_space<vmem>>, vector<1x256xf32>
    %13 = vector.broadcast %12 : vector<1x256xf32> to vector<16x256xf32>
    %14 = arith.addf %11, %13 : vector<16x256xf32>
    %cst_11 = arith.constant 0.000000e+00 : f32
    %15 = vector.broadcast %cst_11 : f32 to vector<16x256xf32>
    %16 = arith.subf %15, %14 : vector<16x256xf32>
    %17 = math.exp %16 : vector<16x256xf32>
    %cst_12 = arith.constant 1.000000e+00 : f32
    %18 = vector.broadcast %cst_12 : f32 to vector<16x256xf32>
    %19 = arith.addf %18, %17 : vector<16x256xf32>
    %20 = tpu.reciprocal %19 {approx = true} : vector<16x256xf32> -> vector<16x256xf32>
    %21 = arith.truncf %20 : vector<16x256xf32> to vector<16x256xbf16>
    %c0_13 = arith.constant 0 : index
    %c0_14 = arith.constant 0 : index
    %22 = vector.load %arg6[%c0_13, %c0_14] : memref<256x80xbf16, #tpu.memory_space<vmem>>, vector<256x80xbf16>
    %cst_15 = arith.constant dense<0.000000e+00> : vector<16x80xf32>
    %23 = tpu.matmul %21, %22, %cst_15 {dimension_numbers = #tpu.dot_dimension_numbers<[1], [0], [0], [1], [0, 0, 1, 1], [], []>} : vector<16x256xbf16>, vector<256x80xbf16>, vector<16x80xf32> -> vector<16x80xf32>
    %c0_16 = arith.constant 0 : index
    %c0_17 = arith.constant 0 : index
    %24 = vector.load %arg7[%c0_16, %c0_17] : memref<1x80xf32, #tpu.memory_space<vmem>>, vector<1x80xf32>
    %25 = vector.broadcast %24 : vector<1x80xf32> to vector<16x80xf32>
    %26 = arith.addf %23, %25 : vector<16x80xf32>
    %cst_18 = arith.constant 0.000000e+00 : f32
    %27 = vector.broadcast %cst_18 : f32 to vector<16x80xf32>
    %28 = arith.maximumf %26, %27 : vector<16x80xf32>
    %29 = arith.truncf %28 : vector<16x80xf32> to vector<16x80xbf16>
    %c0_19 = arith.constant 0 : index
    %c0_20 = arith.constant 0 : index
    %30 = vector.load %arg8[%c0_19, %c0_20] : memref<80x8xbf16, #tpu.memory_space<vmem>>, vector<80x8xbf16>
    %cst_21 = arith.constant dense<0.000000e+00> : vector<16x8xf32>
    %31 = tpu.matmul %29, %30, %cst_21 {dimension_numbers = #tpu.dot_dimension_numbers<[1], [0], [0], [1], [0, 0, 1, 1], [], []>} : vector<16x80xbf16>, vector<80x8xbf16>, vector<16x8xf32> -> vector<16x8xf32>
    %c0_22 = arith.constant 0 : index
    %c0_23 = arith.constant 0 : index
    %32 = vector.load %arg9[%c0_22, %c0_23] : memref<1x8xf32, #tpu.memory_space<vmem>>, vector<1x8xf32>
    %33 = vector.broadcast %32 : vector<1x8xf32> to vector<16x8xf32>
    %34 = arith.addf %31, %33 : vector<16x8xf32>
    %cst_24 = arith.constant 0.000000e+00 : f32
    %35 = vector.broadcast %cst_24 : f32 to vector<16x8xf32>
    %36 = arith.subf %35, %34 : vector<16x8xf32>
    %37 = math.exp %36 : vector<16x8xf32>
    %cst_25 = arith.constant 1.000000e+00 : f32
    %38 = vector.broadcast %cst_25 : f32 to vector<16x8xf32>
    %39 = arith.addf %38, %37 : vector<16x8xf32>
    %40 = tpu.reciprocal %39 {approx = true} : vector<16x8xf32> -> vector<16x8xf32>
    %c0_26 = arith.constant 0 : index
    %c0_27 = arith.constant 0 : index
    %41 = vector.load %arg10[%c0_26, %c0_27] : memref<16x8xf32, #tpu.memory_space<vmem>>, vector<16x8xf32>
    tpu.vector_store %arg10[%c0_26, %c0_27], %40 {strides = array<i32>} : memref<16x8xf32, #tpu.memory_space<vmem>>, vector<16x8xf32>,
    return
  }
  func.func @transform_0(%arg0: i32) -> (i32, i32) {
    %c0_i32 = arith.constant 0 : i32
    %c0_i32_0 = arith.constant 0 : i32
    return %arg0, %c0_i32 : i32, i32
  }
  func.func @transform_1(%arg0: i32) -> (i32, i32) {
    %c0_i32 = arith.constant 0 : i32
    %c0_i32_0 = arith.constant 0 : i32
    %c0_i32_1 = arith.constant 0 : i32
    return %c0_i32, %c0_i32_0 : i32, i32
  }
  func.func @transform_2(%arg0: i32) -> (i32, i32) {
    %c0_i32 = arith.constant 0 : i32
    %c0_i32_0 = arith.constant 0 : i32
    %c0_i32_1 = arith.constant 0 : i32
    return %c0_i32, %c0_i32_0 : i32, i32
  }
  func.func @transform_3(%arg0: i32) -> (i32, i32) {
    %c0_i32 = arith.constant 0 : i32
    %c0_i32_0 = arith.constant 0 : i32
    %c0_i32_1 = arith.constant 0 : i32
    return %c0_i32, %c0_i32_0 : i32, i32
  }
  func.func @transform_4(%arg0: i32) -> (i32, i32) {
    %c0_i32 = arith.constant 0 : i32
    %c0_i32_0 = arith.constant 0 : i32
    %c0_i32_1 = arith.constant 0 : i32
    return %c0_i32, %c0_i32_0 : i32, i32
  }
  func.func @transform_5(%arg0: i32) -> (i32, i32) {
    %c0_i32 = arith.constant 0 : i32
    %c0_i32_0 = arith.constant 0 : i32
    %c0_i32_1 = arith.constant 0 : i32
    return %c0_i32, %c0_i32_0 : i32, i32
  }
  func.func @transform_6(%arg0: i32) -> (i32, i32) {
    %c0_i32 = arith.constant 0 : i32
    %c0_i32_0 = arith.constant 0 : i32
    %c0_i32_1 = arith.constant 0 : i32
    return %c0_i32, %c0_i32_0 : i32, i32
  }
  func.func @transform_7(%arg0: i32) -> (i32, i32) {
    %c0_i32 = arith.constant 0 : i32
    %c0_i32_0 = arith.constant 0 : i32
    %c0_i32_1 = arith.constant 0 : i32
    return %c0_i32, %c0_i32_0 : i32, i32
  }
  func.func @transform_8(%arg0: i32) -> (i32, i32) {
    %c0_i32 = arith.constant 0 : i32
    %c0_i32_0 = arith.constant 0 : i32
    %c0_i32_1 = arith.constant 0 : i32
    return %c0_i32, %c0_i32_0 : i32, i32
  }
  func.func @transform_9(%arg0: i32) -> (i32, i32) {
    %c0_i32 = arith.constant 0 : i32
    %c0_i32_0 = arith.constant 0 : i32
    return %arg0, %c0_i32 : i32, i32
  }
}

</mosaic_0001>

<llo_original>
// kernel: tpu_custom_call.1
$region0: #{tpu_custom_call.1}
  #allocation0 [shape = 'u32[]', space=smem, size = 0x4, offset = 0x4, fixed_abs, tag = 'smem constant byte address 0x4 - core index']
  #allocation1 [shape = 'u32[72,128]{1,0:T(1,128)}', space=vmem, size = 0x9000, scoped, tag = 'internal scratch']
  %s0 = inlined_call_operand.vmem [shape: f32[16,128], index: 0, kind: input, shape index: {}]
  %s1 = inlined_call_operand.hbm [shape: bf16[128,512], index: 1, kind: input, shape index: {}]
  %s2 = inlined_call_operand.vmem [shape: f32[1,512], index: 2, kind: input, shape index: {}]
  %s3 = inlined_call_operand.hbm [shape: bf16[512,256], index: 3, kind: input, shape index: {}]
  %s4 = inlined_call_operand.vmem [shape: f32[1,256], index: 4, kind: input, shape index: {}]
  %s5 = inlined_call_operand.vmem [shape: bf16[256,80], index: 5, kind: input, shape index: {}]
  %s6 = inlined_call_operand.vmem [shape: f32[1,80], index: 6, kind: input, shape index: {}]
  %s7 = inlined_call_operand.vmem [shape: bf16[80,8], index: 7, kind: input, shape index: {}]
  %s8 = inlined_call_operand.vmem [shape: f32[1,8], index: 8, kind: input, shape index: {}]
  %s9 = inlined_call_operand.vmem [shape: f32[16,8], index: 9, kind: output, shape index: {}]
  %s10 = sld [smem:[#allocation0]]
  $region54: #{tpu_custom_call.1} parent=0
    _
  %s12 = ssub.s32 1, %s10
  %s13 = scalar_select 0, %s12, %s10
  $region1: #{tpu_custom_call.1} parent=0
    #allocation2 [shape = 'u8[131072]{0}', space=vmem, size = 0x20000, scoped, tag = 'input window, operand 1, single buffered']
    #allocation3 [shape = 's32[1]{0}', space=sflag, size = 0x4, scoped, tag = 'scoped memory for tpu_custom_call.1']
    #allocation4 [shape = 'u8[262144]{0}', space=vmem, size = 0x40000, scoped, tag = 'input window, operand 3, single buffered']
    #allocation5 [shape = 's32[1]{0}', space=sflag, size = 0x4, scoped, tag = 'scoped memory for tpu_custom_call.1']
    %14 = vsyncpa [#allocation3], 0
    %15 = vsyncpa [#allocation5], 0
    // Predicated region
    $region2: #{tpu_custom_call.1} parent=1 // pred_check
      _
    $region3: #{tpu_custom_call.1} parent=1 // pred_check_branch
      %17 = sbr.rel (0) target = $region5
    $region4: #{tpu_custom_call.1} parent=1 // pred_region
      _
    $region5: #{tpu_custom_call.1} parent=1 // pred_fallthru
      _
    // Predicated region
    $region6: #{tpu_custom_call.1} parent=1 // pred_check
      _
    $region7: #{tpu_custom_call.1} parent=1 // pred_check_branch
      %19 = sbr.rel (0) target = $region9
    $region8: #{tpu_custom_call.1} parent=1 // pred_region
      %21 = vsyncadd [#allocation3], 0
      %s22 = sshll.u32 %s1, 4
      %s23 = int_to_ptr.hbm [resolvable:$true] %s22
      %s24 = sshll.u32 [#allocation2], 4
      %s25 = int_to_ptr.vmem [resolvable:$true] %s24
      %30 = dma.hbm_to_vmem [thread:$0]  %s23, 4096, %s25, [#allocation3], 256, 256, 16
    $region9: #{tpu_custom_call.1} parent=1 // pred_fallthru
      _
    // Predicated region
    $region10: #{tpu_custom_call.1} parent=1 // pred_check
      _
    $region11: #{tpu_custom_call.1} parent=1 // pred_check_branch
      %32 = sbr.rel (0) target = $region13
    $region12: #{tpu_custom_call.1} parent=1 // pred_region
      _
    $region13: #{tpu_custom_call.1} parent=1 // pred_fallthru
      _
    // Predicated region
    $region14: #{tpu_custom_call.1} parent=1 // pred_check
      _
    $region15: #{tpu_custom_call.1} parent=1 // pred_check_branch
      %34 = sbr.rel (0) target = $region17
    $region16: #{tpu_custom_call.1} parent=1 // pred_region
      %36 = vsyncadd [#allocation5], 0
      %s37 = sshll.u32 %s3, 4
      %s38 = int_to_ptr.hbm [resolvable:$true] %s37
      %s39 = sshll.u32 [#allocation4], 4
      %s40 = int_to_ptr.vmem [resolvable:$true] %s39
      %45 = dma.hbm_to_vmem [thread:$0]  %s38, 8192, %s40, [#allocation5], 128, 128, 8
    $region17: #{tpu_custom_call.1} parent=1 // pred_fallthru
      _
    // Predicated region
    $region18: #{tpu_custom_call.1} parent=1 // pred_check
      _
    $region19: #{tpu_custom_call.1} parent=1 // pred_check_branch
      %47 = sbr.rel (0) target = $region21
    $region20: #{tpu_custom_call.1} parent=1 // pred_region
      _
    $region21: #{tpu_custom_call.1} parent=1 // pred_fallthru
      _
    // Predicated region
    $region22: #{tpu_custom_call.1} parent=1 // pred_check
      _
    $region23: #{tpu_custom_call.1} parent=1 // pred_check_branch
      %49 = sbr.rel (0) target = $region25
    $region24: #{tpu_custom_call.1} parent=1 // pred_region
      _
    $region25: #{tpu_custom_call.1} parent=1 // pred_fallthru
      _
    // Predicated region
    $region26: #{tpu_custom_call.1} parent=1 // pred_check
      _
    $region27: #{tpu_custom_call.1} parent=1 // pred_check_branch
      %51 = sbr.rel (0) target = $region29
    $region28: #{tpu_custom_call.1} parent=1 // pred_region
      _
    $region29: #{tpu_custom_call.1} parent=1 // pred_fallthru
      _
    // Predicated region
    $region30: #{tpu_custom_call.1} parent=1 // pred_check
      _
    $region31: #{tpu_custom_call.1} parent=1 // pred_check_branch
      %53 = sbr.rel (0) target = $region33
    $region32: #{tpu_custom_call.1} parent=1 // pred_region
      _
    $region33: #{tpu_custom_call.1} parent=1 // pred_fallthru
      _
    // Predicated region
    $region34: #{tpu_custom_call.1} parent=1 // pred_check
      _
    $region35: #{tpu_custom_call.1} parent=1 // pred_check_branch
      %55 = sbr.rel (0) target = $region37
    $region36: #{tpu_custom_call.1} parent=1 // pred_region
      _
    $region37: #{tpu_custom_call.1} parent=1 // pred_fallthru
      _
    // Predicated region
    $region38: #{tpu_custom_call.1} parent=1 // pred_check
      _
    $region39: #{tpu_custom_call.1} parent=1 // pred_check_branch
      %57 = sbr.rel (0) target = $region41
    $region40: #{tpu_custom_call.1} parent=1 // pred_region
      %59 = dma.done [#allocation3], 4096
    $region41: #{tpu_custom_call.1} parent=1 // pred_fallthru
      _
    // Predicated region
    $region42: #{tpu_custom_call.1} parent=1 // pred_check
      _
    $region43: #{tpu_custom_call.1} parent=1 // pred_check_branch
      %61 = sbr.rel (0) target = $region45
    $region44: #{tpu_custom_call.1} parent=1 // pred_region
      %63 = dma.done [#allocation5], 8192
    $region45: #{tpu_custom_call.1} parent=1 // pred_fallthru
      _
    %v65 = vld [vmem:[%s0] sm:$0xff]
    %v66 = vld [vmem:[%s0 + $0x8] sm:$0xff]
    %v67 = vpack.c.bf16 %v66, %v65
    %v68 = vld [vmem:[#allocation2] sm:$0xff]
    %v69 = vld [vmem:[#allocation2 + $0x8] sm:$0xff]
    %v70 = vld [vmem:[#allocation2 + $0x10] sm:$0xff]
    %v71 = vld [vmem:[#allocation2 + $0x18] sm:$0xff]
    %v72 = vld [vmem:[#allocation2 + $0x20] sm:$0xff]
    %v73 = vld [vmem:[#allocation2 + $0x28] sm:$0xff]
    %v74 = vld [vmem:[#allocation2 + $0x30] sm:$0xff]
    %v75 = vld [vmem:[#allocation2 + $0x38] sm:$0xff]
    %v76 = vld [vmem:[#allocation2 + $0x40] sm:$0xff]
    %v77 = vld [vmem:[#allocation2 + $0x48] sm:$0xff]
    %v78 = vld [vmem:[#allocation2 + $0x50] sm:$0xff]
    %v79 = vld [vmem:[#allocation2 + $0x58] sm:$0xff]
    %v80 = vld [vmem:[#allocation2 + $0x60] sm:$0xff]
    %v81 = vld [vmem:[#allocation2 + $0x68] sm:$0xff]
    %v82 = vld [vmem:[#allocation2 + $0x70] sm:$0xff]
    %v83 = vld [vmem:[#allocation2 + $0x78] sm:$0xff]
    %v84 = vld [vmem:[#allocation2 + $0x80] sm:$0xff]
    %v85 = vld [vmem:[#allocation2 + $0x88] sm:$0xff]
    %v86 = vld [vmem:[#allocation2 + $0x90] sm:$0xff]
    %v87 = vld [vmem:[#allocation2 + $0x98] sm:$0xff]
    %v88 = vld [vmem:[#allocation2 + $0xa0] sm:$0xff]
    %v89 = vld [vmem:[#allocation2 + $0xa8] sm:$0xff]
    %v90 = vld [vmem:[#allocation2 + $0xb0] sm:$0xff]
    %v91 = vld [vmem:[#allocation2 + $0xb8] sm:$0xff]
    %v92 = vld [vmem:[#allocation2 + $0xc0] sm:$0xff]
    %v93 = vld [vmem:[#allocation2 + $0xc8] sm:$0xff]
    %v94 = vld [vmem:[#allocation2 + $0xd0] sm:$0xff]
    %v95 = vld [vmem:[#allocation2 + $0xd8] sm:$0xff]
    %v96 = vld [vmem:[#allocation2 + $0xe0] sm:$0xff]
    %v97 = vld [vmem:[#allocation2 + $0xe8] sm:$0xff]
    %v98 = vld [vmem:[#allocation2 + $0xf0] sm:$0xff]
    %v99 = vld [vmem:[#allocation2 + $0xf8] sm:$0xff]
    %v100 = vld [vmem:[%s2] sm:$0xf]
    %v102 = vperm.slane %v100, 0
    %v103 = vperm.slane %v100, 1
    %v104 = vperm.slane %v100, 2
    %v105 = vperm.slane %v100, 3
    %v142 = vunpack.c.l.b16 %v68
    %v143 = vunpack.c.h.b16 %v68
    %v144 = vunpack.c.l.b16 %v69
    %v145 = vunpack.c.h.b16 %v69
    %v146 = vunpack.c.l.b16 %v70
    %v147 = vunpack.c.h.b16 %v70
    %v148 = vunpack.c.l.b16 %v71
    %v149 = vunpack.c.h.b16 %v71
    %v150 = vunpack.c.l.b16 %v72
    %v151 = vunpack.c.h.b16 %v72
    %v152 = vunpack.c.l.b16 %v73
    %v153 = vunpack.c.h.b16 %v73
    %v154 = vunpack.c.l.b16 %v74
    %v155 = vunpack.c.h.b16 %v74
    %v156 = vunpack.c.l.b16 %v75
    %v157 = vunpack.c.h.b16 %v75
    %v158 = vunpack.c.l.b16 %v76
    %v159 = vunpack.c.h.b16 %v76
    %v160 = vunpack.c.l.b16 %v77
    %v161 = vunpack.c.h.b16 %v77
    %v162 = vunpack.c.l.b16 %v78
    %v163 = vunpack.c.h.b16 %v78
    %v164 = vunpack.c.l.b16 %v79
    %v165 = vunpack.c.h.b16 %v79
    %v166 = vunpack.c.l.b16 %v80
    %v167 = vunpack.c.h.b16 %v80
    %v168 = vunpack.c.l.b16 %v81
    %v169 = vunpack.c.h.b16 %v81
    %v170 = vunpack.c.l.b16 %v82
    %v171 = vunpack.c.h.b16 %v82
    %v172 = vunpack.c.l.b16 %v83
    %v173 = vunpack.c.h.b16 %v83
    %v174 = vunpack.c.l.b16 %v84
    %v175 = vunpack.c.h.b16 %v84
    %v176 = vunpack.c.l.b16 %v85
    %v177 = vunpack.c.h.b16 %v85
    %v178 = vunpack.c.l.b16 %v86
    %v179 = vunpack.c.h.b16 %v86
    %v180 = vunpack.c.l.b16 %v87
    %v181 = vunpack.c.h.b16 %v87
    %v182 = vunpack.c.l.b16 %v88
    %v183 = vunpack.c.h.b16 %v88
    %v184 = vunpack.c.l.b16 %v89
    %v185 = vunpack.c.h.b16 %v89
    %v186 = vunpack.c.l.b16 %v90
    %v187 = vunpack.c.h.b16 %v90
    %v188 = vunpack.c.l.b16 %v91
    %v189 = vunpack.c.h.b16 %v91
    %v190 = vunpack.c.l.b16 %v92
    %v191 = vunpack.c.h.b16 %v92
    %v192 = vunpack.c.l.b16 %v93
    %v193 = vunpack.c.h.b16 %v93
    %v194 = vunpack.c.l.b16 %v94
    %v195 = vunpack.c.h.b16 %v94
    %v196 = vunpack.c.l.b16 %v95
    %v197 = vunpack.c.h.b16 %v95
    %v198 = vunpack.c.l.b16 %v96
    %v199 = vunpack.c.h.b16 %v96
    %v200 = vunpack.c.l.b16 %v97
    %v201 = vunpack.c.h.b16 %v97
    %v202 = vunpack.c.l.b16 %v98
    %v203 = vunpack.c.h.b16 %v98
    %v204 = vunpack.c.l.b16 %v99
    %v205 = vunpack.c.h.b16 %v99
    %v206 = vpack.c.b16 %v146, %v142
    %v207 = vpack.c.b16 %v147, %v143
    %v208 = vpack.c.b16 %v148, %v144
    %v209 = vpack.c.b16 %v149, %v145
    %v210 = vpack.c.b16 %v154, %v150
    %v211 = vpack.c.b16 %v155, %v151
    %v212 = vpack.c.b16 %v156, %v152
    %v213 = vpack.c.b16 %v157, %v153
    %v214 = vpack.c.b16 %v162, %v158
    %v215 = vpack.c.b16 %v163, %v159
    %v216 = vpack.c.b16 %v164, %v160
    %v217 = vpack.c.b16 %v165, %v161
    %v218 = vpack.c.b16 %v170, %v166
    %v219 = vpack.c.b16 %v171, %v167
    %v220 = vpack.c.b16 %v172, %v168
    %v221 = vpack.c.b16 %v173, %v169
    %v222 = vpack.c.b16 %v178, %v174
    %v223 = vpack.c.b16 %v179, %v175
    %v224 = vpack.c.b16 %v180, %v176
    %v225 = vpack.c.b16 %v181, %v177
    %v226 = vpack.c.b16 %v186, %v182
    %v227 = vpack.c.b16 %v187, %v183
    %v228 = vpack.c.b16 %v188, %v184
    %v229 = vpack.c.b16 %v189, %v185
    %v230 = vpack.c.b16 %v194, %v190
    %v231 = vpack.c.b16 %v195, %v191
    %v232 = vpack.c.b16 %v196, %v192
    %v233 = vpack.c.b16 %v197, %v193
    %v234 = vpack.c.b16 %v202, %v198
    %v235 = vpack.c.b16 %v203, %v199
    %v236 = vpack.c.b16 %v204, %v200
    %v237 = vpack.c.b16 %v205, %v201
    %270 = vmatpush.bf16.msra.mxu0 %v234
    %271 = vmatpush.bf16.msra.mxu0 %v230
    %272 = vmatpush.bf16.msra.mxu0 %v226
    %273 = vmatpush.bf16.msra.mxu0 %v222
    %274 = vmatpush.bf16.msra.mxu0 %v218
    %275 = vmatpush.bf16.msra.mxu0 %v214
    %276 = vmatpush.bf16.msra.mxu0 %v210
    %277 = vmatpush.bf16.msra.mxu0 %v206
    %278 = vmatmul.bf16.gmra.mxu0 %v67
    %v279 = vpop.f32.mrf.mxu0
    %v280 = vadd.f32 %v102, %v279
    %v281 = vpop.f32.mrf.mxu0
    %v282 = vadd.f32 %v102, %v281
    %283 = vdwg.mxu0
    %284 = vmatpush.bf16.msra.mxu0 %v235
    %285 = vmatpush.bf16.msra.mxu0 %v231
    %286 = vmatpush.bf16.msra.mxu0 %v227
    %287 = vmatpush.bf16.msra.mxu0 %v223
    %288 = vmatpush.bf16.msra.mxu0 %v219
    %289 = vmatpush.bf16.msra.mxu0 %v215
    %290 = vmatpush.bf16.msra.mxu0 %v211
    %291 = vmatpush.bf16.msra.mxu0 %v207
    %292 = vmatmul.bf16.gmra.mxu0 %v67
    %v293 = vpop.f32.mrf.mxu0
    %v294 = vadd.f32 %v103, %v293
    %v295 = vpop.f32.mrf.mxu0
    %v296 = vadd.f32 %v103, %v295
    %297 = vdwg.mxu0
    %298 = vmatpush.bf16.msra.mxu0 %v236
    %299 = vmatpush.bf16.msra.mxu0 %v232
    %300 = vmatpush.bf16.msra.mxu0 %v228
    %301 = vmatpush.bf16.msra.mxu0 %v224
    %302 = vmatpush.bf16.msra.mxu0 %v220
    %303 = vmatpush.bf16.msra.mxu0 %v216
    %304 = vmatpush.bf16.msra.mxu0 %v212
    %305 = vmatpush.bf16.msra.mxu0 %v208
    %306 = vmatmul.bf16.gmra.mxu0 %v67
    %v307 = vpop.f32.mrf.mxu0
    %v308 = vadd.f32 %v104, %v307
    %v309 = vpop.f32.mrf.mxu0
    %v310 = vadd.f32 %v104, %v309
    %311 = vdwg.mxu0
    %312 = vmatpush.bf16.msra.mxu0 %v237
    %313 = vmatpush.bf16.msra.mxu0 %v233
    %314 = vmatpush.bf16.msra.mxu0 %v229
    %315 = vmatpush.bf16.msra.mxu0 %v225
    %316 = vmatpush.bf16.msra.mxu0 %v221
    %317 = vmatpush.bf16.msra.mxu0 %v217
    %318 = vmatpush.bf16.msra.mxu0 %v213
    %319 = vmatpush.bf16.msra.mxu0 %v209
    %320 = vmatmul.bf16.gmra.mxu0 %v67
    %v321 = vpop.f32.mrf.mxu0
    %v322 = vadd.f32 %v105, %v321
    %v323 = vpop.f32.mrf.mxu0
    %v324 = vadd.f32 %v105, %v323
    %325 = vdwg.mxu0
    %v326 = vmax.f32 %v280, 0.0
    %v327 = vmax.f32 %v294, 0.0
    %v328 = vmax.f32 %v308, 0.0
    %v329 = vmax.f32 %v322, 0.0
    %v330 = vmax.f32 %v282, 0.0
    %v331 = vmax.f32 %v296, 0.0
    %v332 = vmax.f32 %v310, 0.0
    %v333 = vmax.f32 %v324, 0.0
    %v334 = vpack.c.bf16 %v330, %v326
    %v335 = vpack.c.bf16 %v331, %v327
    %v336 = vpack.c.bf16 %v332, %v328
    %v337 = vpack.c.bf16 %v333, %v329
    %v338 = vld [vmem:[#allocation4] sm:$0xff]
    %v339 = vld [vmem:[#allocation4 + $0x8] sm:$0xff]
    %v340 = vld [vmem:[#allocation4 + $0x10] sm:$0xff]
    %v341 = vld [vmem:[#allocation4 + $0x18] sm:$0xff]
    %v342 = vld [vmem:[#allocation4 + $0x20] sm:$0xff]
    %v343 = vld [vmem:[#allocation4 + $0x28] sm:$0xff]
    %v344 = vld [vmem:[#allocation4 + $0x30] sm:$0xff]
    %v345 = vld [vmem:[#allocation4 + $0x38] sm:$0xff]
    %v346 = vld [vmem:[#allocation4 + $0x40] sm:$0xff]
    %v347 = vld [vmem:[#allocation4 + $0x48] sm:$0xff]
    %v348 = vld [vmem:[#allocation4 + $0x50] sm:$0xff]
    %v349 = vld [vmem:[#allocation4 + $0x58] sm:$0xff]
    %v350 = vld [vmem:[#allocation4 + $0x60] sm:$0xff]
    %v351 = vld [vmem:[#allocation4 + $0x68] sm:$0xff]
    %v352 = vld [vmem:[#allocation4 + $0x70] sm:$0xff]
    %v353 = vld [vmem:[#allocation4 + $0x78] sm:$0xff]
    %v354 = vld [vmem:[#allocation4 + $0x80] sm:$0xff]
    %v355 = vld [vmem:[#allocation4 + $0x88] sm:$0xff]
    %v356 = vld [vmem:[#allocation4 + $0x90] sm:$0xff]
    %v357 = vld [vmem:[#allocation4 + $0x98] sm:$0xff]
    %v358 = vld [vmem:[#allocation4 + $0xa0] sm:$0xff]
    %v359 = vld [vmem:[#allocation4 + $0xa8] sm:$0xff]
    %v360 = vld [vmem:[#allocation4 + $0xb0] sm:$0xff]
    %v361 = vld [vmem:[#allocation4 + $0xb8] sm:$0xff]
    %v362 = vld [vmem:[#allocation4 + $0xc0] sm:$0xff]
    %v363 = vld [vmem:[#allocation4 + $0xc8] sm:$0xff]
    %v364 = vld [vmem:[#allocation4 + $0xd0] sm:$0xff]
    %v365 = vld [vmem:[#allocation4 + $0xd8] sm:$0xff]
    %v366 = vld [vmem:[#allocation4 + $0xe0] sm:$0xff]
    %v367 = vld [vmem:[#allocation4 + $0xe8] sm:$0xff]
    %v368 = vld [vmem:[#allocation4 + $0xf0] sm:$0xff]
    %v369 = vld [vmem:[#allocation4 + $0xf8] sm:$0xff]
    %v370 = vld [vmem:[#allocation4 + $0x100] sm:$0xff]
    %v371 = vld [vmem:[#allocation4 + $0x108] sm:$0xff]
    %v372 = vld [vmem:[#allocation4 + $0x110] sm:$0xff]
    %v373 = vld [vmem:[#allocation4 + $0x118] sm:$0xff]
    %v374 = vld [vmem:[#allocation4 + $0x120] sm:$0xff]
    %v375 = vld [vmem:[#allocation4 + $0x128] sm:$0xff]
    %v376 = vld [vmem:[#allocation4 + $0x130] sm:$0xff]
    %v377 = vld [vmem:[#allocation4 + $0x138] sm:$0xff]
    %v378 = vld [vmem:[#allocation4 + $0x140] sm:$0xff]
    %v379 = vld [vmem:[#allocation4 + $0x148] sm:$0xff]
    %v380 = vld [vmem:[#allocation4 + $0x150] sm:$0xff]
    %v381 = vld [vmem:[#allocation4 + $0x158] sm:$0xff]
    %v382 = vld [vmem:[#allocation4 + $0x160] sm:$0xff]
    %v383 = vld [vmem:[#allocation4 + $0x168] sm:$0xff]
    %v384 = vld [vmem:[#allocation4 + $0x170] sm:$0xff]
    %v385 = vld [vmem:[#allocation4 + $0x178] sm:$0xff]
    %v386 = vld [vmem:[#allocation4 + $0x180] sm:$0xff]
    %v387 = vld [vmem:[#allocation4 + $0x188] sm:$0xff]
    %v388 = vld [vmem:[#allocation4 + $0x190] sm:$0xff]
    %v389 = vld [vmem:[#allocation4 + $0x198] sm:$0xff]
    %v390 = vld [vmem:[#allocation4 + $0x1a0] sm:$0xff]
    %v391 = vld [vmem:[#allocation4 + $0x1a8] sm:$0xff]
    %v392 = vld [vmem:[#allocation4 + $0x1b0] sm:$0xff]
    %v393 = vld [vmem:[#allocation4 + $0x1b8] sm:$0xff]
    %v394 = vld [vmem:[#allocation4 + $0x1c0] sm:$0xff]
    %v395 = vld [vmem:[#allocation4 + $0x1c8] sm:$0xff]
    %v396 = vld [vmem:[#allocation4 + $0x1d0] sm:$0xff]
    %v397 = vld [vmem:[#allocation4 + $0x1d8] sm:$0xff]
    %v398 = vld [vmem:[#allocation4 + $0x1e0] sm:$0xff]
    %v399 = vld [vmem:[#allocation4 + $0x1e8] sm:$0xff]
    %v400 = vld [vmem:[#allocation4 + $0x1f0] sm:$0xff]
    %v401 = vld [vmem:[#allocation4 + $0x1f8] sm:$0xff]
    %v402 = vld [vmem:[%s4] sm:$0x3]
    %v404 = vperm.slane %v402, 0
    %v405 = vperm.slane %v402, 1
    %v472 = vunpack.c.l.b16 %v338
    %v473 = vunpack.c.h.b16 %v338
    %v474 = vunpack.c.l.b16 %v339
    %v475 = vunpack.c.h.b16 %v339
    %v476 = vunpack.c.l.b16 %v340
    %v477 = vunpack.c.h.b16 %v340
    %v478 = vunpack.c.l.b16 %v341
    %v479 = vunpack.c.h.b16 %v341
    %v480 = vunpack.c.l.b16 %v342
    %v481 = vunpack.c.h.b16 %v342
    %v482 = vunpack.c.l.b16 %v343
    %v483 = vunpack.c.h.b16 %v343
    %v484 = vunpack.c.l.b16 %v344
    %v485 = vunpack.c.h.b16 %v344
    %v486 = vunpack.c.l.b16 %v345
    %v487 = vunpack.c.h.b16 %v345
    %v488 = vunpack.c.l.b16 %v346
    %v489 = vunpack.c.h.b16 %v346
    %v490 = vunpack.c.l.b16 %v347
    %v491 = vunpack.c.h.b16 %v347
    %v492 = vunpack.c.l.b16 %v348
    %v493 = vunpack.c.h.b16 %v348
    %v494 = vunpack.c.l.b16 %v349
    %v495 = vunpack.c.h.b16 %v349
    %v496 = vunpack.c.l.b16 %v350
    %v497 = vunpack.c.h.b16 %v350
    %v498 = vunpack.c.l.b16 %v351
    %v499 = vunpack.c.h.b16 %v351
    %v500 = vunpack.c.l.b16 %v352
    %v501 = vunpack.c.h.b16 %v352
    %v502 = vunpack.c.l.b16 %v353
    %v503 = vunpack.c.h.b16 %v353
    %v504 = vunpack.c.l.b16 %v354
    %v505 = vunpack.c.h.b16 %v354
    %v506 = vunpack.c.l.b16 %v355
    %v507 = vunpack.c.h.b16 %v355
    %v508 = vunpack.c.l.b16 %v356
    %v509 = vunpack.c.h.b16 %v356
    %v510 = vunpack.c.l.b16 %v357
    %v511 = vunpack.c.h.b16 %v357
    %v512 = vunpack.c.l.b16 %v358
    %v513 = vunpack.c.h.b16 %v358
    %v514 = vunpack.c.l.b16 %v359
    %v515 = vunpack.c.h.b16 %v359
    %v516 = vunpack.c.l.b16 %v360
    %v517 = vunpack.c.h.b16 %v360
    %v518 = vunpack.c.l.b16 %v361
    %v519 = vunpack.c.h.b16 %v361
    %v520 = vunpack.c.l.b16 %v362
    %v521 = vunpack.c.h.b16 %v362
    %v522 = vunpack.c.l.b16 %v363
    %v523 = vunpack.c.h.b16 %v363
    %v524 = vunpack.c.l.b16 %v364
    %v525 = vunpack.c.h.b16 %v364
    %v526 = vunpack.c.l.b16 %v365
    %v527 = vunpack.c.h.b16 %v365
    %v528 = vunpack.c.l.b16 %v366
    %v529 = vunpack.c.h.b16 %v366
    %v530 = vunpack.c.l.b16 %v367
    %v531 = vunpack.c.h.b16 %v367
    %v532 = vunpack.c.l.b16 %v368
    %v533 = vunpack.c.h.b16 %v368
    %v534 = vunpack.c.l.b16 %v369
    %v535 = vunpack.c.h.b16 %v369
    %v536 = vunpack.c.l.b16 %v370
    %v537 = vunpack.c.h.b16 %v370
    %v538 = vunpack.c.l.b16 %v371
    %v539 = vunpack.c.h.b16 %v371
    %v540 = vunpack.c.l.b16 %v372
    %v541 = vunpack.c.h.b16 %v372
    %v542 = vunpack.c.l.b16 %v373
    %v543 = vunpack.c.h.b16 %v373
    %v544 = vunpack.c.l.b16 %v374
    %v545 = vunpack.c.h.b16 %v374
    %v546 = vunpack.c.l.b16 %v375
    %v547 = vunpack.c.h.b16 %v375
    %v548 = vunpack.c.l.b16 %v376
    %v549 = vunpack.c.h.b16 %v376
    %v550 = vunpack.c.l.b16 %v377
    %v551 = vunpack.c.h.b16 %v377
    %v552 = vunpack.c.l.b16 %v378
    %v553 = vunpack.c.h.b16 %v378
    %v554 = vunpack.c.l.b16 %v379
    %v555 = vunpack.c.h.b16 %v379
    %v556 = vunpack.c.l.b16 %v380
    %v557 = vunpack.c.h.b16 %v380
    %v558 = vunpack.c.l.b16 %v381
    %v559 = vunpack.c.h.b16 %v381
    %v560 = vunpack.c.l.b16 %v382
    %v561 = vunpack.c.h.b16 %v382
    %v562 = vunpack.c.l.b16 %v383
    %v563 = vunpack.c.h.b16 %v383
    %v564 = vunpack.c.l.b16 %v384
    %v565 = vunpack.c.h.b16 %v384
    %v566 = vunpack.c.l.b16 %v385
    %v567 = vunpack.c.h.b16 %v385
    %v568 = vunpack.c.l.b16 %v386
    %v569 = vunpack.c.h.b16 %v386
    %v570 = vunpack.c.l.b16 %v387
    %v571 = vunpack.c.h.b16 %v387
    %v572 = vunpack.c.l.b16 %v388
    %v573 = vunpack.c.h.b16 %v388
    %v574 = vunpack.c.l.b16 %v389
    %v575 = vunpack.c.h.b16 %v389
    %v576 = vunpack.c.l.b16 %v390
    %v577 = vunpack.c.h.b16 %v390
    %v578 = vunpack.c.l.b16 %v391
    %v579 = vunpack.c.h.b16 %v391
    %v580 = vunpack.c.l.b16 %v392
    %v581 = vunpack.c.h.b16 %v392
    %v582 = vunpack.c.l.b16 %v393
    %v583 = vunpack.c.h.b16 %v393
    %v584 = vunpack.c.l.b16 %v394
    %v585 = vunpack.c.h.b16 %v394
    %v586 = vunpack.c.l.b16 %v395
    %v587 = vunpack.c.h.b16 %v395
    %v588 = vunpack.c.l.b16 %v396
    %v589 = vunpack.c.h.b16 %v396
    %v590 = vunpack.c.l.b16 %v397
    %v591 = vunpack.c.h.b16 %v397
    %v592 = vunpack.c.l.b16 %v398
    %v593 = vunpack.c.h.b16 %v398
    %v594 = vunpack.c.l.b16 %v399
    %v595 = vunpack.c.h.b16 %v399
    %v596 = vunpack.c.l.b16 %v400
    %v597 = vunpack.c.h.b16 %v400
    %v598 = vunpack.c.l.b16 %v401
    %v599 = vunpack.c.h.b16 %v401
    %v600 = vpack.c.b16 %v474, %v472
    %v601 = vpack.c.b16 %v475, %v473
    %v602 = vpack.c.b16 %v478, %v476
    %v603 = vpack.c.b16 %v479, %v477
    %v604 = vpack.c.b16 %v482, %v480
    %v605 = vpack.c.b16 %v483, %v481
    %v606 = vpack.c.b16 %v486, %v484
    %v607 = vpack.c.b16 %v487, %v485
    %v608 = vpack.c.b16 %v490, %v488
    %v609 = vpack.c.b16 %v491, %v489
    %v610 = vpack.c.b16 %v494, %v492
    %v611 = vpack.c.b16 %v495, %v493
    %v612 = vpack.c.b16 %v498, %v496
    %v613 = vpack.c.b16 %v499, %v497
    %v614 = vpack.c.b16 %v502, %v500
    %v615 = vpack.c.b16 %v503, %v501
    %v616 = vpack.c.b16 %v506, %v504
    %v617 = vpack.c.b16 %v507, %v505
    %v618 = vpack.c.b16 %v510, %v508
    %v619 = vpack.c.b16 %v511, %v509
    %v620 = vpack.c.b16 %v514, %v512
    %v621 = vpack.c.b16 %v515, %v513
    %v622 = vpack.c.b16 %v518, %v516
    %v623 = vpack.c.b16 %v519, %v517
    %v624 = vpack.c.b16 %v522, %v520
    %v625 = vpack.c.b16 %v523, %v521
    %v626 = vpack.c.b16 %v526, %v524
    %v627 = vpack.c.b16 %v527, %v525
    %v628 = vpack.c.b16 %v530, %v528
    %v629 = vpack.c.b16 %v531, %v529
    %v630 = vpack.c.b16 %v534, %v532
    %v631 = vpack.c.b16 %v535, %v533
    %v632 = vpack.c.b16 %v538, %v536
    %v633 = vpack.c.b16 %v539, %v537
    %v634 = vpack.c.b16 %v542, %v540
    %v635 = vpack.c.b16 %v543, %v541
    %v636 = vpack.c.b16 %v546, %v544
    %v637 = vpack.c.b16 %v547, %v545
    %v638 = vpack.c.b16 %v550, %v548
    %v639 = vpack.c.b16 %v551, %v549
    %v640 = vpack.c.b16 %v554, %v552
    %v641 = vpack.c.b16 %v555, %v553
    %v642 = vpack.c.b16 %v558, %v556
    %v643 = vpack.c.b16 %v559, %v557
    %v644 = vpack.c.b16 %v562, %v560
    %v645 = vpack.c.b16 %v563, %v561
    %v646 = vpack.c.b16 %v566, %v564
    %v647 = vpack.c.b16 %v567, %v565
    %v648 = vpack.c.b16 %v570, %v568
    %v649 = vpack.c.b16 %v571, %v569
    %v650 = vpack.c.b16 %v574, %v572
    %v651 = vpack.c.b16 %v575, %v573
    %v652 = vpack.c.b16 %v578, %v576
    %v653 = vpack.c.b16 %v579, %v577
    %v654 = vpack.c.b16 %v582, %v580
    %v655 = vpack.c.b16 %v583, %v581
    %v656 = vpack.c.b16 %v586, %v584
    %v657 = vpack.c.b16 %v587, %v585
    %v658 = vpack.c.b16 %v590, %v588
    %v659 = vpack.c.b16 %v591, %v589
    %v660 = vpack.c.b16 %v594, %v592
    %v661 = vpack.c.b16 %v595, %v593
    %v662 = vpack.c.b16 %v598, %v596
    %v663 = vpack.c.b16 %v599, %v597
    %728 = vmatpush.bf16.msra.mxu0 %v614
    %729 = vmatpush.bf16.msra.mxu0 %v612
    %730 = vmatpush.bf16.msra.mxu0 %v610
    %731 = vmatpush.bf16.msra.mxu0 %v608
    %732 = vmatpush.bf16.msra.mxu0 %v606
    %733 = vmatpush.bf16.msra.mxu0 %v604
    %734 = vmatpush.bf16.msra.mxu0 %v602
    %735 = vmatpush.bf16.msra.mxu0 %v600
    %736 = vmatmul.bf16.gmra.mxu0 %v334
    %v737 = vpop.f32.mrf.mxu0
    %v738 = vadd.f32 %v404, %v737
    %v739 = vpop.f32.mrf.mxu0
    %v740 = vadd.f32 %v404, %v739
    %741 = vdwg.mxu0
    %742 = vmatpush.bf16.msra.mxu0 %v630
    %743 = vmatpush.bf16.msra.mxu0 %v628
    %744 = vmatpush.bf16.msra.mxu0 %v626
    %745 = vmatpush.bf16.msra.mxu0 %v624
    %746 = vmatpush.bf16.msra.mxu0 %v622
    %747 = vmatpush.bf16.msra.mxu0 %v620
    %748 = vmatpush.bf16.msra.mxu0 %v618
    %749 = vmatpush.bf16.msra.mxu0 %v616
    %750 = vmatmul.bf16.gmra.mxu0 %v335
    %v751 = vpop.f32.mrf.mxu0
    %v752 = vadd.f32 %v738, %v751
    %v753 = vpop.f32.mrf.mxu0
    %v754 = vadd.f32 %v740, %v753
    %755 = vdwg.mxu0
    %756 = vmatpush.bf16.msra.mxu0 %v646
    %757 = vmatpush.bf16.msra.mxu0 %v644
    %758 = vmatpush.bf16.msra.mxu0 %v642
    %759 = vmatpush.bf16.msra.mxu0 %v640
    %760 = vmatpush.bf16.msra.mxu0 %v638
    %761 = vmatpush.bf16.msra.mxu0 %v636
    %762 = vmatpush.bf16.msra.mxu0 %v634
    %763 = vmatpush.bf16.msra.mxu0 %v632
    %764 = vmatmul.bf16.gmra.mxu0 %v336
    %v765 = vpop.f32.mrf.mxu0
    %v766 = vadd.f32 %v752, %v765
    %v767 = vpop.f32.mrf.mxu0
    %v768 = vadd.f32 %v754, %v767
    %769 = vdwg.mxu0
    %770 = vmatpush.bf16.msra.mxu0 %v662
    %771 = vmatpush.bf16.msra.mxu0 %v660
    %772 = vmatpush.bf16.msra.mxu0 %v658
    %773 = vmatpush.bf16.msra.mxu0 %v656
    %774 = vmatpush.bf16.msra.mxu0 %v654
    %775 = vmatpush.bf16.msra.mxu0 %v652
    %776 = vmatpush.bf16.msra.mxu0 %v650
    %777 = vmatpush.bf16.msra.mxu0 %v648
    %778 = vmatmul.bf16.gmra.mxu0 %v337
    %v779 = vpop.f32.mrf.mxu0
    %v780 = vadd.f32 %v766, %v779
    %v781 = vpop.f32.mrf.mxu0
    %v782 = vadd.f32 %v768, %v781
    %783 = vdwg.mxu0
    %784 = vmatpush.bf16.msra.mxu0 %v615
    %785 = vmatpush.bf16.msra.mxu0 %v613
    %786 = vmatpush.bf16.msra.mxu0 %v611
    %787 = vmatpush.bf16.msra.mxu0 %v609
    %788 = vmatpush.bf16.msra.mxu0 %v607
    %789 = vmatpush.bf16.msra.mxu0 %v605
    %790 = vmatpush.bf16.msra.mxu0 %v603
    %791 = vmatpush.bf16.msra.mxu0 %v601
    %792 = vmatmul.bf16.gmra.mxu0 %v334
    %v793 = vpop.f32.mrf.mxu0
    %v794 = vadd.f32 %v405, %v793
    %v795 = vpop.f32.mrf.mxu0
    %v796 = vadd.f32 %v405, %v795
    %797 = vdwg.mxu0
    %798 = vmatpush.bf16.msra.mxu0 %v631
    %799 = vmatpush.bf16.msra.mxu0 %v629
    %800 = vmatpush.bf16.msra.mxu0 %v627
    %801 = vmatpush.bf16.msra.mxu0 %v625
    %802 = vmatpush.bf16.msra.mxu0 %v623
    %803 = vmatpush.bf16.msra.mxu0 %v621
    %804 = vmatpush.bf16.msra.mxu0 %v619
    %805 = vmatpush.bf16.msra.mxu0 %v617
    %806 = vmatmul.bf16.gmra.mxu0 %v335
    %v807 = vpop.f32.mrf.mxu0
    %v808 = vadd.f32 %v794, %v807
    %v809 = vpop.f32.mrf.mxu0
    %v810 = vadd.f32 %v796, %v809
    %811 = vdwg.mxu0
    %812 = vmatpush.bf16.msra.mxu0 %v647
    %813 = vmatpush.bf16.msra.mxu0 %v645
    %814 = vmatpush.bf16.msra.mxu0 %v643
    %815 = vmatpush.bf16.msra.mxu0 %v641
    %816 = vmatpush.bf16.msra.mxu0 %v639
    %817 = vmatpush.bf16.msra.mxu0 %v637
    %818 = vmatpush.bf16.msra.mxu0 %v635
    %819 = vmatpush.bf16.msra.mxu0 %v633
    %820 = vmatmul.bf16.gmra.mxu0 %v336
    %v821 = vpop.f32.mrf.mxu0
    %v822 = vadd.f32 %v808, %v821
    %v823 = vpop.f32.mrf.mxu0
    %v824 = vadd.f32 %v810, %v823
    %825 = vdwg.mxu0
    %826 = vmatpush.bf16.msra.mxu0 %v663
    %827 = vmatpush.bf16.msra.mxu0 %v661
    %828 = vmatpush.bf16.msra.mxu0 %v659
    %829 = vmatpush.bf16.msra.mxu0 %v657
    %830 = vmatpush.bf16.msra.mxu0 %v655
    %831 = vmatpush.bf16.msra.mxu0 %v653
    %832 = vmatpush.bf16.msra.mxu0 %v651
    %833 = vmatpush.bf16.msra.mxu0 %v649
    %834 = vmatmul.bf16.gmra.mxu0 %v337
    %v835 = vpop.f32.mrf.mxu0
    %v836 = vadd.f32 %v822, %v835
    %v837 = vpop.f32.mrf.mxu0
    %v838 = vadd.f32 %v824, %v837
    %839 = vdwg.mxu0
    %v840 = vsub.f32 0.0, %v780
    %v841 = vsub.f32 0.0, %v836
    %v842 = vsub.f32 0.0, %v782
    %v843 = vsub.f32 0.0, %v838
    %v844 = vmul.f32 %v840, 1.442695
    %v845 = vpow.pop %v844
    %v846 = vmul.f32 %v841, 1.442695
    %v847 = vpow.pop %v846
    %v848 = vmul.f32 %v842, 1.442695
    %v849 = vpow.pop %v848
    %v850 = vmul.f32 %v843, 1.442695
    %v851 = vpow.pop %v850
    %v852 = vadd.f32 %v845, 1.0
    %v853 = vadd.f32 %v847, 1.0
    %v854 = vadd.f32 %v849, 1.0
    %v855 = vadd.f32 %v851, 1.0
    %v856 = vrcp.pop %v852
    %v857 = vrcp.pop %v853
    %v858 = vrcp.pop %v854
    %v859 = vrcp.pop %v855
    %v860 = vpack.c.bf16 %v858, %v856
    %v861 = vpack.c.bf16 %v859, %v857
    %v862 = vld [vmem:[%s5] sm:$0xf]
    %v863 = vld [vmem:[%s5 + $0x4] sm:$0xf]
    %v864 = vld [vmem:[%s5 + $0x8] sm:$0xf]
    %v865 = vld [vmem:[%s5 + $0xc] sm:$0xf]
    %v866 = vld [vmem:[%s5 + $0x10] sm:$0xf]
    %v867 = vld [vmem:[%s5 + $0x14] sm:$0xf]
    %v868 = vld [vmem:[%s5 + $0x18] sm:$0xf]
    %v869 = vld [vmem:[%s5 + $0x1c] sm:$0xf]
    %v870 = vld [vmem:[%s5 + $0x20] sm:$0xf]
    %v871 = vld [vmem:[%s5 + $0x24] sm:$0xf]
    %v872 = vld [vmem:[%s5 + $0x28] sm:$0xf]
    %v873 = vld [vmem:[%s5 + $0x2c] sm:$0xf]
    %v874 = vld [vmem:[%s5 + $0x30] sm:$0xf]
    %v875 = vld [vmem:[%s5 + $0x34] sm:$0xf]
    %v876 = vld [vmem:[%s5 + $0x38] sm:$0xf]
    %v877 = vld [vmem:[%s5 + $0x3c] sm:$0xf]
    %v878 = vld [vmem:[%s5 + $0x40] sm:$0xf]
    %v879 = vld [vmem:[%s5 + $0x44] sm:$0xf]
    %v880 = vld [vmem:[%s5 + $0x48] sm:$0xf]
    %v881 = vld [vmem:[%s5 + $0x4c] sm:$0xf]
    %v882 = vld [vmem:[%s5 + $0x50] sm:$0xf]
    %v883 = vld [vmem:[%s5 + $0x54] sm:$0xf]
    %v884 = vld [vmem:[%s5 + $0x58] sm:$0xf]
    %v885 = vld [vmem:[%s5 + $0x5c] sm:$0xf]
    %v886 = vld [vmem:[%s5 + $0x60] sm:$0xf]
    %v887 = vld [vmem:[%s5 + $0x64] sm:$0xf]
    %v888 = vld [vmem:[%s5 + $0x68] sm:$0xf]
    %v889 = vld [vmem:[%s5 + $0x6c] sm:$0xf]
    %v890 = vld [vmem:[%s5 + $0x70] sm:$0xf]
    %v891 = vld [vmem:[%s5 + $0x74] sm:$0xf]
    %v892 = vld [vmem:[%s5 + $0x78] sm:$0xf]
    %v893 = vld [vmem:[%s5 + $0x7c] sm:$0xf]
    %v894 = vld [vmem:[%s6] sm:$0x1]
    %v896 = vperm.slane %v894, 0
    %v930 = vunpack.c.l.b16 %v862
    %v931 = vunpack.c.l.b16 %v863
    %v932 = vunpack.c.l.b16 %v864
    %v933 = vunpack.c.l.b16 %v865
    %v934 = vunpack.c.l.b16 %v866
    %v935 = vunpack.c.l.b16 %v867
    %v936 = vunpack.c.l.b16 %v868
    %v937 = vunpack.c.l.b16 %v869
    %v938 = vunpack.c.l.b16 %v870
    %v939 = vunpack.c.l.b16 %v871
    %v940 = vunpack.c.l.b16 %v872
    %v941 = vunpack.c.l.b16 %v873
    %v942 = vunpack.c.l.b16 %v874
    %v943 = vunpack.c.l.b16 %v875
    %v944 = vunpack.c.l.b16 %v876
    %v945 = vunpack.c.l.b16 %v877
    %v946 = vunpack.c.l.b16 %v878
    %v947 = vunpack.c.l.b16 %v879
    %v948 = vunpack.c.l.b16 %v880
    %v949 = vunpack.c.l.b16 %v881
    %v950 = vunpack.c.l.b16 %v882
    %v951 = vunpack.c.l.b16 %v883
    %v952 = vunpack.c.l.b16 %v884
    %v953 = vunpack.c.l.b16 %v885
    %v954 = vunpack.c.l.b16 %v886
    %v955 = vunpack.c.l.b16 %v887
    %v956 = vunpack.c.l.b16 %v888
    %v957 = vunpack.c.l.b16 %v889
    %v958 = vunpack.c.l.b16 %v890
    %v959 = vunpack.c.l.b16 %v891
    %v960 = vunpack.c.l.b16 %v892
    %v961 = vunpack.c.l.b16 %v893
    %v962 = vpack.c.b16 %v931, %v930
    %v963 = vpack.c.b16 %v933, %v932
    %v964 = vpack.c.b16 %v935, %v934
    %v965 = vpack.c.b16 %v937, %v936
    %v966 = vpack.c.b16 %v939, %v938
    %v967 = vpack.c.b16 %v941, %v940
    %v968 = vpack.c.b16 %v943, %v942
    %v969 = vpack.c.b16 %v945, %v944
    %v970 = vpack.c.b16 %v947, %v946
    %v971 = vpack.c.b16 %v949, %v948
    %v972 = vpack.c.b16 %v951, %v950
    %v973 = vpack.c.b16 %v953, %v952
    %v974 = vpack.c.b16 %v955, %v954
    %v975 = vpack.c.b16 %v957, %v956
    %v976 = vpack.c.b16 %v959, %v958
    %v977 = vpack.c.b16 %v961, %v960
    %994 = vmatpush.bf16.msra.mxu0 %v969
    %995 = vmatpush.bf16.msra.mxu0 %v968
    %996 = vmatpush.bf16.msra.mxu0 %v967
    %997 = vmatpush.bf16.msra.mxu0 %v966
    %998 = vmatpush.bf16.msra.mxu0 %v965
    %999 = vmatpush.bf16.msra.mxu0 %v964
    %1000 = vmatpush.bf16.msra.mxu0 %v963
    %1001 = vmatpush.bf16.msra.mxu0 %v962
    %1002 = vmatmul.bf16.gmra.mxu0 %v860
    %v1003 = vpop.f32.mrf.mxu0
    %v1004 = vadd.f32 %v896, %v1003
    %v1005 = vpop.f32.mrf.mxu0
    %v1006 = vadd.f32 %v896, %v1005
    %1007 = vdwg.mxu0
    %1008 = vmatpush.bf16.msra.mxu0 %v977
    %1009 = vmatpush.bf16.msra.mxu0 %v976
    %1010 = vmatpush.bf16.msra.mxu0 %v975
    %1011 = vmatpush.bf16.msra.mxu0 %v974
    %1012 = vmatpush.bf16.msra.mxu0 %v973
    %1013 = vmatpush.bf16.msra.mxu0 %v972
    %1014 = vmatpush.bf16.msra.mxu0 %v971
    %1015 = vmatpush.bf16.msra.mxu0 %v970
    %1016 = vmatmul.bf16.gmra.mxu0 %v861
    %v1017 = vpop.f32.mrf.mxu0
    %v1018 = vadd.f32 %v1004, %v1017
    %v1019 = vpop.f32.mrf.mxu0
    %v1020 = vadd.f32 %v1006, %v1019
    %1021 = vdwg.mxu0
    %v1022 = vmax.f32 %v1018, 0.0
    %v1023 = vmax.f32 %v1020, 0.0
    %v1024 = vpack.c.bf16 %v1023, %v1022
    %v1025 = vld [vmem:[%s7] sm:$0xf]
    %v1026 = vld [vmem:[%s7 + $0x4] sm:$0xf]
    %v1027 = vld [vmem:[%s7 + $0x8] sm:$0xf]
    %v1028 = vld [vmem:[%s7 + $0xc] sm:$0xf]
    %v1029 = vld [vmem:[%s7 + $0x10] sm:$0xf]
    %v1030 = vld [vmem:[%s7 + $0x14] sm:$0xf]
    %v1031 = vld [vmem:[%s7 + $0x18] sm:$0xf]
    %v1032 = vld [vmem:[%s7 + $0x1c] sm:$0xf]
    %v1033 = vld [vmem:[%s7 + $0x20] sm:$0xf]
    %v1034 = vld [vmem:[%s7 + $0x24] sm:$0xf]
    %v1035 = vld [vmem:[%s8] sm:$0x1]
    %v1037 = vperm.slane %v1035, 0
    %v1049 = vunpack.c.l.b16 %v1025
    %v1050 = vunpack.c.l.b16 %v1026
    %v1051 = vunpack.c.l.b16 %v1027
    %v1052 = vunpack.c.l.b16 %v1028
    %v1053 = vunpack.c.l.b16 %v1029
    %v1054 = vunpack.c.l.b16 %v1030
    %v1055 = vunpack.c.l.b16 %v1031
    %v1056 = vunpack.c.l.b16 %v1032
    %v1057 = vunpack.c.l.b16 %v1033
    %v1058 = vunpack.c.l.b16 %v1034
    %v1059 = vpack.c.b16 %v1050, %v1049
    %v1060 = vpack.c.b16 %v1052, %v1051
    %v1061 = vpack.c.b16 %v1054, %v1053
    %v1062 = vpack.c.b16 %v1056, %v1055
    %v1063 = vpack.c.b16 %v1058, %v1057
    %vm1069 = vcmask 654336
    %v1071 = vsel %vm1069, %v1024, 0
    %1073 = vmatpush.bf16.msra.mxu0 0
    %1074 = vmatpush.bf16.msra.mxu0 0
    %1075 = vmatpush.bf16.msra.mxu0 0
    %1076 = vmatpush.bf16.msra.mxu0 %v1063
    %1077 = vmatpush.bf16.msra.mxu0 %v1062
    %1078 = vmatpush.bf16.msra.mxu0 %v1061
    %1079 = vmatpush.bf16.msra.mxu0 %v1060
    %1080 = vmatpush.bf16.msra.mxu0 %v1059
    %1081 = vmatmul.bf16.gmra.mxu0 %v1071
    %v1082 = vpop.f32.mrf.mxu0
    %v1083 = vadd.f32 %v1037, %v1082
    %v1084 = vpop.f32.mrf.mxu0
    %v1085 = vadd.f32 %v1037, %v1084
    %1086 = vdwg.mxu0
    %v1087 = vsub.f32 0.0, %v1083
    %v1088 = vsub.f32 0.0, %v1085
    %v1089 = vmul.f32 %v1087, 1.442695
    %v1090 = vpow.pop %v1089
    %v1091 = vmul.f32 %v1088, 1.442695
    %v1092 = vpow.pop %v1091
    %v1093 = vadd.f32 %v1090, 1.0
    %v1094 = vadd.f32 %v1092, 1.0
    %v1095 = vrcp.pop %v1093
    %v1096 = vrcp.pop %v1094
    %vm1097 = vcmask 64512
    %1098 = vst.msk [vmem:[%s9] sm:$0xff] %vm1097, %v1095
    %1099 = vst.msk [vmem:[%s9 + $0x8] sm:$0xff] %vm1097, %v1096
    // Predicated region
    $region46: #{tpu_custom_call.1} parent=1 // pred_check
      _
    $region47: #{tpu_custom_call.1} parent=1 // pred_check_branch
      %1101 = sbr.rel (0) target = $region49
    $region48: #{tpu_custom_call.1} parent=1 // pred_region
      _
    $region49: #{tpu_custom_call.1} parent=1 // pred_fallthru
      _
    // Predicated region
    $region50: #{tpu_custom_call.1} parent=1 // pred_check
      _
    $region51: #{tpu_custom_call.1} parent=1 // pred_check_branch
      %1103 = sbr.rel (0) target = $region53
    $region52: #{tpu_custom_call.1} parent=1 // pred_region
      _
    $region53: #{tpu_custom_call.1} parent=1 // pred_fallthru
      _
    %1104 = vsyncpa [#allocation3], 1
    %1105 = vsyncpa [#allocation5], 1

</llo_original>
